<compile_context>
chip_gen: v6e
topology: v6e:2x2x1
jax: 0.10.0
libtpu: 0.0.40
codegen_flags: <defaults>
</compile_context>

<pallas_src>
import functools

import jax
import jax.numpy as jnp
from jax.experimental import pallas as pl
from jax.experimental.pallas import tpu as pltpu


def adversary_fwd_kernel(x_ref, w1_ref, b1_ref, w2_ref, b2_ref,
                         s_ref, sum_ref, acc_ref, *, n_valid):
    """One lane-tile of regressor + sigmoid, plus partial-sum accumulation.

    x_ref  : (2, T)  f32  VMEM   batch on lanes
    w1_ref : (H, 2)  f32  VMEM   resident across grid steps
    b1_ref : (H, 1)  f32  VMEM
    w2_ref : (H, 1)  f32  VMEM
    b2_ref : (1, 1)  f32  SMEM   scalar
    s_ref  : (1, T)  f32  VMEM   lane-dense sigmoid output tile
    sum_ref: (1, 1)  f32  SMEM   global sum of valid sigmoid values
    acc_ref: (1, 1)  f32  SMEM scratch (persists across grid steps)
    """
    i = pl.program_id(0)
    tile_n = s_ref.shape[-1]

    # ---- Layer 1: Linear(2, H) as two VPU broadcast multiply-adds ----------
    x0 = x_ref[0:1, :]                                              # (1, T)
    x1 = x_ref[1:2, :]                                              # (1, T)
    h = w1_ref[:, 0:1] * x0 + w1_ref[:, 1:2] * x1 + b1_ref[...]     # (H, T)
    h = jnp.maximum(h, 0.0)                                         # ReLU

    # ---- Layer 2: Linear(H, 1) as VPU multiply + sublane (XLU) reduce ------
    y = jnp.sum(h * w2_ref[...], axis=0, keepdims=True) + b2_ref[0, 0]  # (1, T)

    # ---- Sigmoid (exact; approx EUP rcp would miss the 1e-5 tolerance) -----
    s = 1.0 / (1.0 + jnp.exp(-y))
    s_ref[...] = s

    # ---- Masked partial sum for the global mean (ignore padding lanes) -----
    lane = jax.lax.broadcasted_iota(jnp.int32, s.shape, 1) + i * tile_n
    tile_sum = jnp.sum(jnp.where(lane < n_valid, s, 0.0))

    @pl.when(i == 0)
    def _():
        acc_ref[0, 0] = jnp.float32(0.0)

    acc_ref[0, 0] += tile_sum

    @pl.when(i == pl.num_programs(0) - 1)
    def _():
        sum_ref[0, 0] = acc_ref[0, 0]


def adversary_nn(x, w1, b1, w2, b2, *, tile_n=2048):
    """AdversaryNN forward: (N, 2) -> (N, 1).

    tile_n: lane-tile size (multiple of 128).  2048 is comfortably inside the
    per-step VMEM budget on v5e/v6e and on v7x's 64 MiB VMEM; sweep upward
    (8K-32K lanes) for very large N if DMA overhead shows up.
    """
    N = x.shape[0]
    H = w1.shape[1]

    # Shrink the tile for small batches, then pad N to a whole number of tiles.
    n_pad128 = ((N + 127) // 128) * 128
    tile_n = min(tile_n, n_pad128)
    n_pad = ((N + tile_n - 1) // tile_n) * tile_n
    grid = (n_pad // tile_n,)

    # Lane-dense input layout: batch on lanes.  (In a real pipeline the caller
    # would hand us xT directly; this transpose/pad is layout plumbing.)
    xT = jnp.pad(x.astype(jnp.float32).T, ((0, 0), (0, n_pad - N)))  # (2, n_pad)
    w1T = w1.astype(jnp.float32).T                    # (H, 2)
    b1T = b1.astype(jnp.float32).reshape(H, 1)        # (H, 1)
    w2c = w2.astype(jnp.float32).reshape(H, 1)        # (H, 1)
    b2s = b2.astype(jnp.float32).reshape(1, 1)        # (1, 1) scalar in SMEM

    kernel = functools.partial(adversary_fwd_kernel, n_valid=N)

    s_pad, s_sum = pl.pallas_call(
        kernel,
        out_shape=(
            jax.ShapeDtypeStruct((1, n_pad), jnp.float32),   # sigmoid values
            jax.ShapeDtypeStruct((1, 1), jnp.float32),       # global sum
        ),
        grid_spec=pltpu.PrefetchScalarGridSpec(
            num_scalar_prefetch=0,
            grid=grid,
            in_specs=[
                pl.BlockSpec((2, tile_n), lambda i: (0, i)),          # xT tile
                pl.BlockSpec((H, 2), lambda i: (0, 0)),               # w1T (resident)
                pl.BlockSpec((H, 1), lambda i: (0, 0)),               # b1T (resident)
                pl.BlockSpec((H, 1), lambda i: (0, 0)),               # w2  (resident)
                pl.BlockSpec(memory_space=pltpu.MemorySpace.SMEM),    # b2 scalar
            ],
            out_specs=[
                pl.BlockSpec((1, tile_n), lambda i: (0, i)),          # lane-dense s
                pl.BlockSpec(memory_space=pltpu.MemorySpace.SMEM),    # sum scalar
            ],
            scratch_shapes=[pltpu.SMEM((1, 1), jnp.float32)],
        ),
        compiler_params=pltpu.CompilerParams(
            # "arbitrary": the running-sum accumulator carries across tiles.
            dimension_semantics=("arbitrary",),
            vmem_limit_bytes=32 << 20,
        ),
    )(xT, w1T, b1T, w2c, b2s)

    # ---- Epilogue: global mean is a cross-tile dependency; this elementwise
    # step is mem-bound either way, so it stays in XLA (per perf review). -----
    s = s_pad[:, :N]                                   # (1, N)
    mean = s_sum[0, 0] / jnp.float32(N)
    denom = jnp.maximum(mean, jnp.float32(1e-4))
    return (s / denom + 1.0).reshape(N, 1)


def reference(x, w1, b1, w2, b2):
    h = jnp.maximum(x @ w1 + b1, 0.0)
    y = h @ w2 + b2
    s = jax.nn.sigmoid(y)
    m = jnp.mean(s)
    return s / jnp.maximum(m, 1e-4) + 1.0


if __name__ == "__main__":
    IN, H, OUT = 2, 32, 1

    key = jax.random.PRNGKey(0)
    kx, k1, k2, k3, k4, kx2 = jax.random.split(key, 6)

    # Deterministic parameter init (PyTorch-like uniform fan-in bounds).
    w1 = jax.random.uniform(k1, (IN, H), jnp.float32, -1.0 / IN**0.5, 1.0 / IN**0.5)
    b1 = jax.random.uniform(k2, (1, H), jnp.float32, -1.0 / IN**0.5, 1.0 / IN**0.5)
    w2 = jax.random.uniform(k3, (H, OUT), jnp.float32, -1.0 / H**0.5, 1.0 / H**0.5)
    b2 = jax.random.uniform(k4, (1, OUT), jnp.float32, -1.0 / H**0.5, 1.0 / H**0.5)

    # Small batch, single tile.
    N = 8
    x = jax.random.normal(kx, (N, IN), dtype=jnp.float32)
    out = adversary_nn(x, w1, b1, w2, b2)
    jax.block_until_ready(out)
    ref = reference(x, w1, b1, w2, b2)
    assert out.shape == (N, 1)
    assert jnp.allclose(out, ref, atol=1e-5, rtol=1e-5), (out, ref)

    # Ragged batch across several tiles (exercises masking + cross-tile sum).
    N2 = 300
    x2 = jax.random.normal(kx2, (N2, IN), dtype=jnp.float32)
    out2 = adversary_nn(x2, w1, b1, w2, b2, tile_n=128)
    jax.block_until_ready(out2)
    ref2 = reference(x2, w1, b1, w2, b2)
    assert out2.shape == (N2, 1)
    assert jnp.allclose(out2, ref2, atol=1e-5, rtol=1e-5), (out2, ref2)

    print("KERNEL_OK")
</pallas_src>

<mosaic_0001>
module attributes {stable_mosaic.version = 11 : i64} {
  func.func @adversary_fwd_kernel(%arg0: i32, %arg1: memref<2x128xf32, #tpu.memory_space<vmem>>, %arg2: memref<32x2xf32, #tpu.memory_space<vmem>>, %arg3: memref<32x1xf32, #tpu.memory_space<vmem>>, %arg4: memref<32x1xf32, #tpu.memory_space<vmem>>, %arg5: memref<1x1xf32, #tpu.memory_space<smem>>, %arg6: memref<1x128xf32, #tpu.memory_space<vmem>>, %arg7: memref<1x1xf32, #tpu.memory_space<smem>>, %arg8: memref<1x1xf32, #tpu.memory_space<smem>>) attributes {dimension_semantics = [#tpu.dimension_semantics<arbitrary>], iteration_bounds = array<i64: 1>, scalar_prefetch = 0 : i64, scratch_operands = 1 : i64, tpu.core_type = #tpu.core_type<tc>, window_params = [{transform_indices = @transform_0, window_bounds = array<i64: 2, 128>}, {pipeline_mode = #tpu.pipeline_mode<synchronous>, transform_indices = @transform_1, window_bounds = array<i64: 32, 2>}, {pipeline_mode = #tpu.pipeline_mode<synchronous>, transform_indices = @transform_2, window_bounds = array<i64: 32, 1>}, {pipeline_mode = #tpu.pipeline_mode<synchronous>, transform_indices = @transform_3, window_bounds = array<i64: 32, 1>}, {transform_indices = @transform_4, window_bounds = array<i64: 1, 1>}, {transform_indices = @transform_5, window_bounds = array<i64: 1, 128>}, {transform_indices = @transform_6, window_bounds = array<i64: 1, 1>}]} {
    %c0 = arith.constant 0 : index
    %c0_0 = arith.constant 0 : index
    %0 = vector.load %arg1[%c0, %c0_0] : memref<2x128xf32, #tpu.memory_space<vmem>>, vector<1x128xf32>
    %c1 = arith.constant 1 : index
    %c0_1 = arith.constant 0 : index
    %1 = vector.load %arg1[%c1, %c0_1] : memref<2x128xf32, #tpu.memory_space<vmem>>, vector<1x128xf32>
    %c0_2 = arith.constant 0 : index
    %c0_3 = arith.constant 0 : index
    %2 = vector.load %arg2[%c0_2, %c0_3] : memref<32x2xf32, #tpu.memory_space<vmem>>, vector<32x1xf32>
    %3 = vector.broadcast %2 : vector<32x1xf32> to vector<32x128xf32>
    %4 = vector.broadcast %0 : vector<1x128xf32> to vector<32x128xf32>
    %5 = arith.mulf %3, %4 : vector<32x128xf32>
    %c0_4 = arith.constant 0 : index
    %c1_5 = arith.constant 1 : index
    %6 = vector.load %arg2[%c0_4, %c1_5] : memref<32x2xf32, #tpu.memory_space<vmem>>, vector<32x1xf32>
    %7 = vector.broadcast %6 : vector<32x1xf32> to vector<32x128xf32>
    %8 = vector.broadcast %1 : vector<1x128xf32> to vector<32x128xf32>
    %9 = arith.mulf %7, %8 : vector<32x128xf32>
    %10 = arith.addf %5, %9 : vector<32x128xf32>
    %c0_6 = arith.constant 0 : index
    %c0_7 = arith.constant 0 : index
    %11 = vector.load %arg3[%c0_6, %c0_7] : memref<32x1xf32, #tpu.memory_space<vmem>>, vector<32x1xf32>
    %12 = vector.broadcast %11 : vector<32x1xf32> to vector<32x128xf32>
    %13 = arith.addf %10, %12 : vector<32x128xf32>
    %cst = arith.constant 0.000000e+00 : f32
    %14 = vector.broadcast %cst : f32 to vector<32x128xf32>
    %15 = arith.maximumf %13, %14 : vector<32x128xf32>
    %c0_8 = arith.constant 0 : index
    %c0_9 = arith.constant 0 : index
    %16 = vector.load %arg4[%c0_8, %c0_9] : memref<32x1xf32, #tpu.memory_space<vmem>>, vector<32x1xf32>
    %17 = vector.broadcast %16 : vector<32x1xf32> to vector<32x128xf32>
    %18 = arith.mulf %15, %17 : vector<32x128xf32>
    %cst_10 = arith.constant dense<0.000000e+00> : vector<128xf32>
    %19 = vector.multi_reduction <add>, %18, %cst_10 [0] : vector<32x128xf32> to vector<128xf32>
    %20 = vector.shape_cast %19 : vector<128xf32> to vector<1x128xf32>
    %c0_11 = arith.constant 0 : index
    %c0_12 = arith.constant 0 : index
    %21 = memref.load %arg5[%c0_11, %c0_12] : memref<1x1xf32, #tpu.memory_space<smem>>
    %22 = vector.broadcast %21 : f32 to vector<1x128xf32>
    %23 = arith.addf %20, %22 : vector<1x128xf32>
    %cst_13 = arith.constant 0.000000e+00 : f32
    %24 = vector.broadcast %cst_13 : f32 to vector<1x128xf32>
    %25 = arith.subf %24, %23 : vector<1x128xf32>
    %26 = math.exp %25 : vector<1x128xf32>
    %cst_14 = arith.constant 1.000000e+00 : f32
    %27 = vector.broadcast %cst_14 : f32 to vector<1x128xf32>
    %28 = arith.addf %27, %26 : vector<1x128xf32>
    %cst_15 = arith.constant 1.000000e+00 : f32
    %29 = vector.broadcast %cst_15 : f32 to vector<1x128xf32>
    %30 = arith.divf %29, %28 : vector<1x128xf32>
    %c0_16 = arith.constant 0 : index
    %c0_17 = arith.constant 0 : index
    %31 = vector.load %arg6[%c0_16, %c0_17] : memref<1x128xf32, #tpu.memory_space<vmem>>, vector<1x128xf32>
    tpu.vector_store %arg6[%c0_16, %c0_17], %30 {strides = array<i32>} : memref<1x128xf32, #tpu.memory_space<vmem>>, vector<1x128xf32>,
    %32 = tpu.iota {dimensions = array<i32: 1>} : vector<1x128xi32>
    %c128_i32 = arith.constant 128 : i32
    %33 = arith.muli %arg0, %c128_i32 : i32
    %34 = vector.broadcast %33 : i32 to vector<1x128xi32>
    %35 = arith.addi %32, %34 : vector<1x128xi32>
    %c8_i32 = arith.constant 8 : i32
    %36 = vector.broadcast %c8_i32 : i32 to vector<1x128xi32>
    %37 = arith.cmpi slt, %35, %36 : vector<1x128xi32>
    %cst_18 = arith.constant 0.000000e+00 : f32
    %38 = vector.broadcast %cst_18 : f32 to vector<1x128xf32>
    %39 = arith.select %37, %30, %38 : vector<1x128xi1>, vector<1x128xf32>
    %40 = vector.shape_cast %39 : vector<1x128xf32> to vector<1x1x128xf32>
    %cst_19 = arith.constant dense<0.000000e+00> : vector<1xf32>
    %41 = vector.multi_reduction <add>, %40, %cst_19 [1, 2] : vector<1x1x128xf32> to vector<1xf32>
    %42 = vector.shape_cast %41 : vector<1xf32> to vector<1x1x1xf32>
    %43 = vector.extract %42[0, 0, 0] : f32 from vector<1x1x1xf32>
    %c0_i32 = arith.constant 0 : i32
    %44 = arith.cmpi eq, %arg0, %c0_i32 : i32
    %45 = arith.extui %44 : i1 to i32
    %c0_i32_20 = arith.constant 0 : i32
    %46 = arith.cmpi ne, %45, %c0_i32_20 : i32
    scf.if %46 {
      %cst_27 = arith.constant 0.000000e+00 : f32
      %c0_28 = arith.constant 0 : index
      %c0_29 = arith.constant 0 : index
      %53 = memref.load %arg8[%c0_28, %c0_29] : memref<1x1xf32, #tpu.memory_space<smem>>
      memref.store %cst_27, %arg8[%c0_28, %c0_29] : memref<1x1xf32, #tpu.memory_space<smem>>
    } else {
    }
    %c0_21 = arith.constant 0 : index
    %c0_22 = arith.constant 0 : index
    %47 = memref.load %arg8[%c0_21, %c0_22] : memref<1x1xf32, #tpu.memory_space<smem>>
    %48 = arith.addf %47, %43 : f32
    %c0_23 = arith.constant 0 : index
    %c0_24 = arith.constant 0 : index
    %49 = memref.load %arg8[%c0_23, %c0_24] : memref<1x1xf32, #tpu.memory_space<smem>>
    memref.store %48, %arg8[%c0_23, %c0_24] : memref<1x1xf32, #tpu.memory_space<smem>>
    %c0_i32_25 = arith.constant 0 : i32
    %50 = arith.cmpi eq, %arg0, %c0_i32_25 : i32
    %51 = arith.extui %50 : i1 to i32
    %c0_i32_26 = arith.constant 0 : i32
    %52 = arith.cmpi ne, %51, %c0_i32_26 : i32
    scf.if %52 {
      %c0_27 = arith.constant 0 : index
      %c0_28 = arith.constant 0 : index
      %53 = memref.load %arg8[%c0_27, %c0_28] : memref<1x1xf32, #tpu.memory_space<smem>>
      %c0_29 = arith.constant 0 : index
      %c0_30 = arith.constant 0 : index
      %54 = memref.load %arg7[%c0_29, %c0_30] : memref<1x1xf32, #tpu.memory_space<smem>>
      memref.store %53, %arg7[%c0_29, %c0_30] : memref<1x1xf32, #tpu.memory_space<smem>>
    } else {
    }
    return
  }
  func.func @transform_0(%arg0: i32) -> (i32, i32) {
    %c0_i32 = arith.constant 0 : i32
    %c0_i32_0 = arith.constant 0 : i32
    return %c0_i32, %arg0 : i32, i32
  }
  func.func @transform_1(%arg0: i32) -> (i32, i32) {
    %c0_i32 = arith.constant 0 : i32
    %c0_i32_0 = arith.constant 0 : i32
    %c0_i32_1 = arith.constant 0 : i32
    return %c0_i32, %c0_i32_0 : i32, i32
  }
  func.func @transform_2(%arg0: i32) -> (i32, i32) {
    %c0_i32 = arith.constant 0 : i32
    %c0_i32_0 = arith.constant 0 : i32
    %c0_i32_1 = arith.constant 0 : i32
    return %c0_i32, %c0_i32_0 : i32, i32
  }
  func.func @transform_3(%arg0: i32) -> (i32, i32) {
    %c0_i32 = arith.constant 0 : i32
    %c0_i32_0 = arith.constant 0 : i32
    %c0_i32_1 = arith.constant 0 : i32
    return %c0_i32, %c0_i32_0 : i32, i32
  }
  func.func @transform_4(%arg0: i32) -> (i32, i32) {
    %c0_i32 = arith.constant 0 : i32
    %c0_i32_0 = arith.constant 0 : i32
    %c0_i32_1 = arith.constant 0 : i32
    return %c0_i32, %c0_i32_0 : i32, i32
  }
  func.func @transform_5(%arg0: i32) -> (i32, i32) {
    %c0_i32 = arith.constant 0 : i32
    %c0_i32_0 = arith.constant 0 : i32
    return %c0_i32, %arg0 : i32, i32
  }
  func.func @transform_6(%arg0: i32) -> (i32, i32) {
    %c0_i32 = arith.constant 0 : i32
    %c0_i32_0 = arith.constant 0 : i32
    %c0_i32_1 = arith.constant 0 : i32
    return %c0_i32, %c0_i32_0 : i32, i32
  }
}

</mosaic_0001>

<llo_original>
// kernel: tpu_custom_call.1
$region0: #{tpu_custom_call.1}
  #allocation0 [shape = 'u32[]', space=smem, size = 0x4, offset = 0x4, fixed_abs, tag = 'smem constant byte address 0x4 - core index']
  #allocation1 [shape = 'u32[144,128]{1,0:T(1,128)}', space=vmem, size = 0x12000, scoped, tag = 'internal scratch']
  #allocation2 [shape = 'f32[1,1]{1,0:T(1,128)}', space=smem, size = 0x200, scoped, tag = 'scratch operand']
  #allocation3 [shape = 'f32[1,1]{1,0:T(1,128)S(6)}', space=smem, size = 0x200, scoped, tag = 'scoped memory for tpu_custom_call.1']
  %s0 = inlined_call_operand.vmem [shape: f32[2,128], index: 0, kind: input, shape index: {}]
  %s1 = inlined_call_operand.vmem [shape: f32[32,2], index: 1, kind: input, shape index: {}]
  %s2 = inlined_call_operand.vmem [shape: f32[32,1], index: 2, kind: input, shape index: {}]
  %s3 = inlined_call_operand.vmem [shape: f32[32,1], index: 3, kind: input, shape index: {}]
  %s4 = inlined_call_operand.<no memory space> [shape: f32[1,1], index: 4, kind: input, shape index: {}]
  %s5 = inlined_call_operand.hbm [shape: f32[1,128], index: 5, kind: output, shape index: {0}]
  %s6 = inlined_call_operand.hbm [shape: f32[1,1], index: 6, kind: output, shape index: {1}]
  %7 = xla_tuple %s5, %s6
  %s8 = sld [smem:[#allocation0]]
  $region46: #{tpu_custom_call.1} parent=0
    _
  %s10 = ssub.s32 1, %s8
  %s11 = scalar_select 0, %s10, %s8
  %12 = sst [smem:[#allocation3]] %s4
  $region1: #{tpu_custom_call.1} parent=0
    #allocation4 [shape = 'u8[512]{0}', space=vmem, size = 0x400, scoped, tag = 'output window, operand 0, single buffered']
    #allocation5 [shape = 's32[1]{0}', space=sflag, size = 0x4, scoped, tag = 'scoped memory for tpu_custom_call.1']
    #allocation6 [shape = 's32[1]{0}', space=sflag, size = 0x4, scoped, tag = 'scoped memory for tpu_custom_call.1']
    #allocation7 [shape = 'u8[512]{0}', space=smem, size = 0x200, scoped, tag = 'output window, operand 1, single buffered']
    %13 = vsyncpa [#allocation5], 0
    %14 = vsyncpa [#allocation6], 0
    // Predicated region
    $region2: #{tpu_custom_call.1} parent=1 // pred_check
      _
    $region3: #{tpu_custom_call.1} parent=1 // pred_check_branch
      %16 = sbr.rel (0) target = $region5
    $region4: #{tpu_custom_call.1} parent=1 // pred_region
      _
    $region5: #{tpu_custom_call.1} parent=1 // pred_fallthru
      _
    // Predicated region
    $region6: #{tpu_custom_call.1} parent=1 // pred_check
      _
    $region7: #{tpu_custom_call.1} parent=1 // pred_check_branch
      %18 = sbr.rel (0) target = $region9
    $region8: #{tpu_custom_call.1} parent=1 // pred_region
      _
    $region9: #{tpu_custom_call.1} parent=1 // pred_fallthru
      _
    // Predicated region
    $region10: #{tpu_custom_call.1} parent=1 // pred_check
      _
    $region11: #{tpu_custom_call.1} parent=1 // pred_check_branch
      %20 = sbr.rel (0) target = $region13
    $region12: #{tpu_custom_call.1} parent=1 // pred_region
      _
    $region13: #{tpu_custom_call.1} parent=1 // pred_fallthru
      _
    // Predicated region
    $region14: #{tpu_custom_call.1} parent=1 // pred_check
      _
    $region15: #{tpu_custom_call.1} parent=1 // pred_check_branch
      %22 = sbr.rel (0) target = $region17
    $region16: #{tpu_custom_call.1} parent=1 // pred_region
      _
    $region17: #{tpu_custom_call.1} parent=1 // pred_fallthru
      _
    // Predicated region
    $region18: #{tpu_custom_call.1} parent=1 // pred_check
      _
    $region19: #{tpu_custom_call.1} parent=1 // pred_check_branch
      %24 = sbr.rel (0) target = $region21
    $region20: #{tpu_custom_call.1} parent=1 // pred_region
      _
    $region21: #{tpu_custom_call.1} parent=1 // pred_fallthru
      _
    %v25 = vld [vmem:[%s0] sm:$0x1]
    %v26 = vld [vmem:[%s0 + $0x1] sm:$0x1]
    %v27 = vld [vmem:[%s1] sm:$0xff]
    %v28 = vld [vmem:[%s1 + $0x8] sm:$0xff]
    %v29 = vld [vmem:[%s1 + $0x10] sm:$0xff]
    %v30 = vld [vmem:[%s1 + $0x18] sm:$0xff]
    %32 = vset.pattern.permute.xlu0 0
    %33 = vperm.xlu0 %32, %v27
    %v34 = vpop.permute.xlu0 %33
    %37 = vset.pattern.permute.xlu0 0
    %38 = vperm.xlu0 %37, %v28
    %v39 = vpop.permute.xlu0 %38
    %42 = vset.pattern.permute.xlu0 0
    %43 = vperm.xlu0 %42, %v29
    %v44 = vpop.permute.xlu0 %43
    %47 = vset.pattern.permute.xlu0 0
    %48 = vperm.xlu0 %47, %v30
    %v49 = vpop.permute.xlu0 %48
    %v51 = vlaneseq
    %v52 = vshrl.u32 %v51, 7
    %v53 = vsub.s32 0, %v52
    %v54 = vrot.slane %v25, %v53
    %v55 = vmul.f32 %v34, %v54
    %v56 = vmul.f32 %v39, %v54
    %v57 = vmul.f32 %v44, %v54
    %v58 = vmul.f32 %v49, %v54
    %59 = vset.pattern.permute.xlu0 1
    %60 = vperm.xlu0 %59, %v27
    %v61 = vpop.permute.xlu0 %60
    %63 = vset.pattern.permute.xlu0 1
    %64 = vperm.xlu0 %63, %v28
    %v65 = vpop.permute.xlu0 %64
    %67 = vset.pattern.permute.xlu0 1
    %68 = vperm.xlu0 %67, %v29
    %v69 = vpop.permute.xlu0 %68
    %71 = vset.pattern.permute.xlu0 1
    %72 = vperm.xlu0 %71, %v30
    %v73 = vpop.permute.xlu0 %72
    %v75 = vlaneseq
    %v76 = vshrl.u32 %v75, 7
    %v77 = vsub.s32 0, %v76
    %v78 = vrot.slane %v26, %v77
    %v79 = vmul.f32 %v61, %v78
    %v80 = vmul.f32 %v65, %v78
    %v81 = vmul.f32 %v69, %v78
    %v82 = vmul.f32 %v73, %v78
    %v83 = vadd.f32 %v55, %v79
    %v84 = vadd.f32 %v56, %v80
    %v85 = vadd.f32 %v57, %v81
    %v86 = vadd.f32 %v58, %v82
    %v87 = vld [vmem:[%s2] sm:$0xff]
    %v88 = vld [vmem:[%s2 + $0x8] sm:$0xff]
    %v89 = vld [vmem:[%s2 + $0x10] sm:$0xff]
    %v90 = vld [vmem:[%s2 + $0x18] sm:$0xff]
    %92 = vset.pattern.permute.xlu0 0
    %93 = vperm.xlu0 %92, %v87
    %v94 = vpop.permute.xlu0 %93
    %97 = vset.pattern.permute.xlu0 0
    %98 = vperm.xlu0 %97, %v88
    %v99 = vpop.permute.xlu0 %98
    %102 = vset.pattern.permute.xlu0 0
    %103 = vperm.xlu0 %102, %v89
    %v104 = vpop.permute.xlu0 %103
    %107 = vset.pattern.permute.xlu0 0
    %108 = vperm.xlu0 %107, %v90
    %v109 = vpop.permute.xlu0 %108
    %v111 = vadd.f32 %v83, %v94
    %v112 = vadd.f32 %v84, %v99
    %v113 = vadd.f32 %v85, %v104
    %v114 = vadd.f32 %v86, %v109
    %v115 = vmax.f32 %v111, 0.0
    %v116 = vmax.f32 %v112, 0.0
    %v117 = vmax.f32 %v113, 0.0
    %v118 = vmax.f32 %v114, 0.0
    %v119 = vld [vmem:[%s3] sm:$0xff]
    %v120 = vld [vmem:[%s3 + $0x8] sm:$0xff]
    %v121 = vld [vmem:[%s3 + $0x10] sm:$0xff]
    %v122 = vld [vmem:[%s3 + $0x18] sm:$0xff]
    %124 = vset.pattern.permute.xlu0 0
    %125 = vperm.xlu0 %124, %v119
    %v126 = vpop.permute.xlu0 %125
    %129 = vset.pattern.permute.xlu0 0
    %130 = vperm.xlu0 %129, %v120
    %v131 = vpop.permute.xlu0 %130
    %134 = vset.pattern.permute.xlu0 0
    %135 = vperm.xlu0 %134, %v121
    %v136 = vpop.permute.xlu0 %135
    %139 = vset.pattern.permute.xlu0 0
    %140 = vperm.xlu0 %139, %v122
    %v141 = vpop.permute.xlu0 %140
    %v143 = vmul.f32 %v115, %v126
    %v144 = vmul.f32 %v116, %v131
    %v145 = vmul.f32 %v117, %v136
    %v146 = vmul.f32 %v118, %v141
    %v147 = vadd.f32 %v143, %v144
    %v148 = vadd.f32 %v147, %v145
    %v149 = vadd.f32 %v148, %v146
    %v150 = vrot.slane %v149, 4
    %v151 = vadd.f32 %v149, %v150
    %v152 = vrot.slane %v151, 2
    %v153 = vadd.f32 %v151, %v152
    %v154 = vrot.slane %v153, 1
    %v155 = vadd.f32 %v153, %v154
    %s156 = sld [smem:[#allocation3]]
    %v157 = vstv %s156
    %v158 = vadd.f32 %v155, %v157
    %v159 = vsub.f32 0.0, %v158
    %v160 = vmul.f32 %v159, 1.442695
    %v161 = vpow.pop %v160
    %v162 = vadd.f32 %v161, 1.0
    %v163 = vrcp.pop %v162
    %v164 = vmul.f32 1.0, %v163
    %165 = vst [vmem:[#allocation4] sm:$0x1] %v164
    %v166 = vlaneseq
    %v167 = vand.u32 %v166, 127
    %s168 = smul.u32 0, 128
    %v169 = vstv %s168
    %v170 = vadd.s32 %v167, %v169
    %vm171 = vcmp.lt.s32.totalorder %v170, 8
    %v172 = vsel %vm171, %v164, 0.0
    %vm173 = vcmask 1040384
    %v174 = vsel %vm173, %v172, 0.0
    %175 = vadd.xlane.f32.xlu0 %v174
    %v176 = vpop.xlane.xlu0 %175
    %v177 = vrot.slane %v176, 4
    %v178 = vadd.f32 %v176, %v177
    %v179 = vrot.slane %v178, 2
    %v180 = vadd.f32 %v178, %v179
    %v181 = vrot.slane %v180, 1
    %v182 = vadd.f32 %v180, %v181
    %s183 = vtos %v182
    %p184 = scmp.eq.s32.totalorder 0, 0
    // Predicated region
    $region22: #{tpu_custom_call.1} parent=1 // pred_check
      %p185 = pneg %p184
    $region23: #{tpu_custom_call.1} parent=1 // pred_check_branch
      %187 = sbr.rel (%p185) target = $region25
    $region24: #{tpu_custom_call.1} parent=1 // pred_region
      %s188 = scalar_lea.smem [#allocation2], 0
      %189 = sst [smem:[%s188]] 0.0
    $region25: #{tpu_custom_call.1} parent=1 // pred_fallthru
      _
    %s190 = sld [smem:[#allocation2]]
    %s191 = sadd.f32 %s190, %s183
    %s192 = scalar_lea.smem [#allocation2], 0
    %193 = sst [smem:[%s192]] %s191
    // Predicated region
    $region26: #{tpu_custom_call.1} parent=1 // pred_check
      %p194 = pneg %p184
    $region27: #{tpu_custom_call.1} parent=1 // pred_check_branch
      %196 = sbr.rel (%p194) target = $region29
    $region28: #{tpu_custom_call.1} parent=1 // pred_region
      %s197 = sld [smem:[#allocation2]]
      %s198 = scalar_lea.smem [#allocation7], 0
      %199 = sst [smem:[%s198]] %s197
    $region29: #{tpu_custom_call.1} parent=1 // pred_fallthru
      _
    // Predicated region
    $region30: #{tpu_custom_call.1} parent=1 // pred_check
      _
    $region31: #{tpu_custom_call.1} parent=1 // pred_check_branch
      %201 = sbr.rel (0) target = $region33
    $region32: #{tpu_custom_call.1} parent=1 // pred_region
      %s203 = ssub.s32 16, 16
      %204 = vsyncadd [#allocation5], %s203
      %s206 = sshll.u32 [#allocation4], 4
      %s207 = int_to_ptr.vmem [resolvable:$true] %s206
      %209 = dma.vmem_to_hbm [thread:$0]  %s207, 16, %s5, [#allocation5]
    $region33: #{tpu_custom_call.1} parent=1 // pred_fallthru
      _
    // Predicated region
    $region34: #{tpu_custom_call.1} parent=1 // pred_check
      _
    $region35: #{tpu_custom_call.1} parent=1 // pred_check_branch
      %211 = sbr.rel (0) target = $region37
    $region36: #{tpu_custom_call.1} parent=1 // pred_region
      %s213 = ssub.s32 16, 16
      %214 = vsyncadd [#allocation6], %s213
      %217 = dma.smem_to_hbm [#allocation7], 16, %s6, [#allocation6]
    $region37: #{tpu_custom_call.1} parent=1 // pred_fallthru
      _
    // Predicated region
    $region38: #{tpu_custom_call.1} parent=1 // pred_check
      _
    $region39: #{tpu_custom_call.1} parent=1 // pred_check_branch
      %219 = sbr.rel (0) target = $region41
    $region40: #{tpu_custom_call.1} parent=1 // pred_region
      %220 = dma.done [#allocation5], 16
    $region41: #{tpu_custom_call.1} parent=1 // pred_fallthru
      _
    // Predicated region
    $region42: #{tpu_custom_call.1} parent=1 // pred_check
      _
    $region43: #{tpu_custom_call.1} parent=1 // pred_check_branch
      %222 = sbr.rel (0) target = $region45
    $region44: #{tpu_custom_call.1} parent=1 // pred_region
      %223 = dma.done [#allocation6], 16
    $region45: #{tpu_custom_call.1} parent=1 // pred_fallthru
      _
    %224 = sfence
    %225 = vsyncpa [#allocation5], 1
    %226 = vsyncpa [#allocation6], 1

</llo_original>
